<compile_context>
chip_gen: v7x
topology: tpu7x:2x2x1
jax: 0.10.0
libtpu: 0.0.40
codegen_flags: <defaults>
</compile_context>

<pallas_src>
import functools
import math

import jax
import jax.numpy as jnp
from jax.experimental import pallas as pl
from jax.experimental.pallas import tpu as pltpu

LOG_STD_MIN = -20.0
LOG_STD_MAX = 2.0


def actor_kernel(x_ref, w1_ref, b1_ref, w2_ref, b2_ref, wh_ref, bh_ref,
                 out_ref, *, act_dim):
    # bf16 operands into the MXU, f32 accumulation.
    x = x_ref[...].astype(jnp.bfloat16)

    # Layer 1: Linear(obs -> hidden) + ReLU
    h1 = jnp.dot(x, w1_ref[...], preferred_element_type=jnp.float32) + b1_ref[...]
    h1 = jnp.maximum(h1, 0.0).astype(jnp.bfloat16)

    # Layer 2: Linear(hidden -> hidden) + ReLU
    h2 = jnp.dot(h1, w2_ref[...], preferred_element_type=jnp.float32) + b2_ref[...]
    h2 = jnp.maximum(h2, 0.0).astype(jnp.bfloat16)

    # Fused heads: one matmul produces [mean || log_std] lanes.
    head = jnp.dot(h2, wh_ref[...], preferred_element_type=jnp.float32) + bh_ref[...]

    # Clip only the log_std columns (cols >= act_dim); mean columns untouched.
    col = jax.lax.broadcasted_iota(jnp.int32, head.shape, 1)
    clipped = jnp.clip(head, LOG_STD_MIN, LOG_STD_MAX)
    head = jnp.where(col >= act_dim, clipped, head)

    out_ref[...] = head.astype(out_ref.dtype)


def fuse_params(params):
    """Concatenate the mean/log_std heads and cast weights to bf16."""
    act_dim = params["wm"].shape[1]
    wh = jnp.concatenate([params["wm"], params["ws"]], axis=1)   # [hidden, 2*act]
    bh = jnp.concatenate([params["bm"], params["bs"]], axis=1)   # [1, 2*act]
    return {
        "w1": params["w1"].astype(jnp.bfloat16),
        "b1": params["b1"],                       # biases stay f32
        "w2": params["w2"].astype(jnp.bfloat16),
        "b2": params["b2"],
        "wh": wh.astype(jnp.bfloat16),
        "bh": bh,
        "act_dim": act_dim,
    }


def actor_forward(state, fused, *, batch_tile=None):
    """state: [B, obs_dim] f32. Returns (mean [B, act_dim], log_std [B, act_dim])."""
    B, obs = state.shape
    act_dim = fused["act_dim"]
    head_dim = 2 * act_dim

    # Batch tile: single grid step for B <= 2048 (amortize ~0.35us/step grid
    # overhead); otherwise 512-row tiles.  Always a multiple of 8 (sublane).
    if batch_tile is None:
        tb = max(8, pl.cdiv(B, 8) * 8) if B <= 2048 else 512
    else:
        tb = batch_tile

    b_pad = pl.cdiv(B, tb) * tb
    n_tiles = b_pad // tb
    # v7x: keep the grid length even (when >1) so the "parallel" batch axis
    # splits evenly across both TensorCores.
    if n_tiles > 1 and n_tiles % 2 == 1:
        n_tiles += 1
        b_pad = n_tiles * tb
    if b_pad != B:
        state = jnp.pad(state, ((0, b_pad - B), (0, 0)))

    kernel = functools.partial(actor_kernel, act_dim=act_dim)

    # Weights/biases use constant index_maps -> DMA'd once, stay VMEM-resident
    # across grid steps. Only the state tile and the output tile move per step.
    # (pipeline_mode=pl.Buffered(1) on the weight specs would shave the unused
    #  double-buffer; skipped as it is negligible at this size.)
    in_specs = [
        pl.BlockSpec((tb, obs), lambda i: (i, 0)),
        pl.BlockSpec(fused["w1"].shape, lambda i: (0, 0)),
        pl.BlockSpec(fused["b1"].shape, lambda i: (0, 0)),
        pl.BlockSpec(fused["w2"].shape, lambda i: (0, 0)),
        pl.BlockSpec(fused["b2"].shape, lambda i: (0, 0)),
        pl.BlockSpec(fused["wh"].shape, lambda i: (0, 0)),
        pl.BlockSpec(fused["bh"].shape, lambda i: (0, 0)),
    ]

    out = pl.pallas_call(
        kernel,
        out_shape=jax.ShapeDtypeStruct((b_pad, head_dim), jnp.float32),
        grid=(n_tiles,),
        in_specs=in_specs,
        out_specs=pl.BlockSpec((tb, head_dim), lambda i: (i, 0)),
        compiler_params=pltpu.CompilerParams(
            dimension_semantics=("parallel",)),
    )(state, fused["w1"], fused["b1"], fused["w2"], fused["b2"],
      fused["wh"], fused["bh"])

    mean = out[:B, :act_dim]
    log_std = out[:B, act_dim:]
    return mean, log_std
    # TODO(synk): for the B~2 per-env-step path the call is launch-bound; the
    # real win is fusing tanh-squash/sampling (module.sample) into this kernel.


def init_linear(key, fan_in, fan_out):
    """Deterministic init mimicking PyTorch nn.Linear default (+/- 1/sqrt(fan_in)).
    Weight stored as [fan_in, fan_out]."""
    bound = 1.0 / math.sqrt(fan_in)
    kw, kb = jax.random.split(key)
    w = jax.random.uniform(kw, (fan_in, fan_out), jnp.float32, -bound, bound)
    b = jax.random.uniform(kb, (1, fan_out), jnp.float32, -bound, bound)
    return w, b


def make_params(key, obs_dim, hidden, act_dim):
    k1, k2, k3, k4 = jax.random.split(key, 4)
    w1, b1 = init_linear(k1, obs_dim, hidden)
    w2, b2 = init_linear(k2, hidden, hidden)
    wm, bm = init_linear(k3, hidden, act_dim)
    ws, bs = init_linear(k4, hidden, act_dim)
    return {"w1": w1, "b1": b1, "w2": w2, "b2": b2,
            "wm": wm, "bm": bm, "ws": ws, "bs": bs}


def reference_forward(state, params):
    h1 = jnp.maximum(state @ params["w1"] + params["b1"], 0.0)
    h2 = jnp.maximum(h1 @ params["w2"] + params["b2"], 0.0)
    mean = h2 @ params["wm"] + params["bm"]
    log_std = jnp.clip(h2 @ params["ws"] + params["bs"], LOG_STD_MIN, LOG_STD_MAX)
    return mean, log_std


if __name__ == "__main__":
    # Walker2d-ish dims: obs=17, action=6, hidden=256 (module default).
    OBS, HIDDEN, ACT = 17, 256, 6

    key = jax.random.PRNGKey(0)
    k_state, k_params, k_big = jax.random.split(key, 3)
    params = make_params(k_params, OBS, HIDDEN, ACT)
    fused = fuse_params(params)

    # bf16 weights + f32 accumulation: compare against the f32 reference with
    # ~1e-2 tolerances (per review).
    ATOL, RTOL = 2e-2, 2e-2

    # Small per-env-step case (B=2, padded to one 8-row tile, single grid step).
    B = 2
    state = jax.random.normal(k_state, (B, OBS), jnp.float32)
    mean, log_std = jax.block_until_ready(actor_forward(state, fused))
    mean_ref, log_std_ref = reference_forward(state, params)
    assert mean.shape == (B, ACT) and log_std.shape == (B, ACT)
    assert jnp.allclose(mean, mean_ref, atol=ATOL, rtol=RTOL)
    assert jnp.allclose(log_std, log_std_ref, atol=ATOL, rtol=RTOL)

    # Batched (rollout-buffer) case: B=300 -> single 304-row grid step.
    BIG = 300
    big_state = jax.random.normal(k_big, (BIG, OBS), jnp.float32)
    mean_b, log_std_b = jax.block_until_ready(actor_forward(big_state, fused))
    mean_b_ref, log_std_b_ref = reference_forward(big_state, params)
    assert mean_b.shape == (BIG, ACT) and log_std_b.shape == (BIG, ACT)
    assert jnp.allclose(mean_b, mean_b_ref, atol=ATOL, rtol=RTOL)
    assert jnp.allclose(log_std_b, log_std_b_ref, atol=ATOL, rtol=RTOL)

    # Explicit multi-step grid path (tb=128 -> grid padded to 4 even steps),
    # exercising the "parallel" batch axis and ragged-row padding.
    mean_g, log_std_g = jax.block_until_ready(
        actor_forward(big_state, fused, batch_tile=128))
    assert jnp.allclose(mean_g, mean_b_ref, atol=ATOL, rtol=RTOL)
    assert jnp.allclose(log_std_g, log_std_b_ref, atol=ATOL, rtol=RTOL)

    print("KERNEL_OK")
</pallas_src>

<mosaic_0001>
module attributes {stable_mosaic.version = 11 : i64} {
  func.func @actor_kernel(%arg0: i32, %arg1: memref<8x17xf32, #tpu.memory_space<vmem>>, %arg2: memref<17x256xbf16, #tpu.memory_space<vmem>>, %arg3: memref<1x256xf32, #tpu.memory_space<vmem>>, %arg4: memref<256x256xbf16, #tpu.memory_space<vmem>>, %arg5: memref<1x256xf32, #tpu.memory_space<vmem>>, %arg6: memref<256x12xbf16, #tpu.memory_space<vmem>>, %arg7: memref<1x12xf32, #tpu.memory_space<vmem>>, %arg8: memref<8x12xf32, #tpu.memory_space<vmem>>) attributes {dimension_semantics = [#tpu.dimension_semantics<parallel>], iteration_bounds = array<i64: 1>, scalar_prefetch = 0 : i64, scratch_operands = 0 : i64, tpu.core_type = #tpu.core_type<tc>, window_params = [{transform_indices = @transform_0, window_bounds = array<i64: 8, 17>}, {pipeline_mode = #tpu.pipeline_mode<synchronous>, transform_indices = @transform_1, window_bounds = array<i64: 17, 256>}, {pipeline_mode = #tpu.pipeline_mode<synchronous>, transform_indices = @transform_2, window_bounds = array<i64: 1, 256>}, {pipeline_mode = #tpu.pipeline_mode<synchronous>, transform_indices = @transform_3, window_bounds = array<i64: 256, 256>}, {pipeline_mode = #tpu.pipeline_mode<synchronous>, transform_indices = @transform_4, window_bounds = array<i64: 1, 256>}, {pipeline_mode = #tpu.pipeline_mode<synchronous>, transform_indices = @transform_5, window_bounds = array<i64: 256, 12>}, {pipeline_mode = #tpu.pipeline_mode<synchronous>, transform_indices = @transform_6, window_bounds = array<i64: 1, 12>}, {transform_indices = @transform_7, window_bounds = array<i64: 8, 12>}]} {
    %c0 = arith.constant 0 : index
    %c0_0 = arith.constant 0 : index
    %0 = vector.load %arg1[%c0, %c0_0] : memref<8x17xf32, #tpu.memory_space<vmem>>, vector<8x17xf32>
    %1 = arith.truncf %0 : vector<8x17xf32> to vector<8x17xbf16>
    %c0_1 = arith.constant 0 : index
    %c0_2 = arith.constant 0 : index
    %2 = vector.load %arg2[%c0_1, %c0_2] : memref<17x256xbf16, #tpu.memory_space<vmem>>, vector<17x256xbf16>
    %cst = arith.constant dense<0.000000e+00> : vector<8x256xf32>
    %3 = tpu.matmul %1, %2, %cst {dimension_numbers = #tpu.dot_dimension_numbers<[1], [0], [0], [1], [0, 0, 1, 1], [], []>} : vector<8x17xbf16>, vector<17x256xbf16>, vector<8x256xf32> -> vector<8x256xf32>
    %c0_3 = arith.constant 0 : index
    %c0_4 = arith.constant 0 : index
    %4 = vector.load %arg3[%c0_3, %c0_4] : memref<1x256xf32, #tpu.memory_space<vmem>>, vector<1x256xf32>
    %5 = vector.broadcast %4 : vector<1x256xf32> to vector<8x256xf32>
    %6 = arith.addf %3, %5 : vector<8x256xf32>
    %cst_5 = arith.constant 0.000000e+00 : f32
    %7 = vector.broadcast %cst_5 : f32 to vector<8x256xf32>
    %8 = arith.maximumf %6, %7 : vector<8x256xf32>
    %9 = arith.truncf %8 : vector<8x256xf32> to vector<8x256xbf16>
    %c0_6 = arith.constant 0 : index
    %c0_7 = arith.constant 0 : index
    %10 = vector.load %arg4[%c0_6, %c0_7] : memref<256x256xbf16, #tpu.memory_space<vmem>>, vector<256x256xbf16>
    %cst_8 = arith.constant dense<0.000000e+00> : vector<8x256xf32>
    %11 = tpu.matmul %9, %10, %cst_8 {dimension_numbers = #tpu.dot_dimension_numbers<[1], [0], [0], [1], [0, 0, 1, 1], [], []>} : vector<8x256xbf16>, vector<256x256xbf16>, vector<8x256xf32> -> vector<8x256xf32>
    %c0_9 = arith.constant 0 : index
    %c0_10 = arith.constant 0 : index
    %12 = vector.load %arg5[%c0_9, %c0_10] : memref<1x256xf32, #tpu.memory_space<vmem>>, vector<1x256xf32>
    %13 = vector.broadcast %12 : vector<1x256xf32> to vector<8x256xf32>
    %14 = arith.addf %11, %13 : vector<8x256xf32>
    %cst_11 = arith.constant 0.000000e+00 : f32
    %15 = vector.broadcast %cst_11 : f32 to vector<8x256xf32>
    %16 = arith.maximumf %14, %15 : vector<8x256xf32>
    %17 = arith.truncf %16 : vector<8x256xf32> to vector<8x256xbf16>
    %c0_12 = arith.constant 0 : index
    %c0_13 = arith.constant 0 : index
    %18 = vector.load %arg6[%c0_12, %c0_13] : memref<256x12xbf16, #tpu.memory_space<vmem>>, vector<256x12xbf16>
    %cst_14 = arith.constant dense<0.000000e+00> : vector<8x12xf32>
    %19 = tpu.matmul %17, %18, %cst_14 {dimension_numbers = #tpu.dot_dimension_numbers<[1], [0], [0], [1], [0, 0, 1, 1], [], []>} : vector<8x256xbf16>, vector<256x12xbf16>, vector<8x12xf32> -> vector<8x12xf32>
    %c0_15 = arith.constant 0 : index
    %c0_16 = arith.constant 0 : index
    %20 = vector.load %arg7[%c0_15, %c0_16] : memref<1x12xf32, #tpu.memory_space<vmem>>, vector<1x12xf32>
    %21 = vector.broadcast %20 : vector<1x12xf32> to vector<8x12xf32>
    %22 = arith.addf %19, %21 : vector<8x12xf32>
    %23 = tpu.iota {dimensions = array<i32: 1>} : vector<8x12xi32>
    %cst_17 = arith.constant -2.000000e+01 : f32
    %cst_18 = arith.constant 2.000000e+00 : f32
    %24 = vector.broadcast %cst_17 : f32 to vector<8x12xf32>
    %25 = arith.maximumf %24, %22 : vector<8x12xf32>
    %26 = vector.broadcast %cst_18 : f32 to vector<8x12xf32>
    %27 = arith.minimumf %26, %25 : vector<8x12xf32>
    %c6_i32 = arith.constant 6 : i32
    %28 = vector.broadcast %c6_i32 : i32 to vector<8x12xi32>
    %29 = arith.cmpi sge, %23, %28 : vector<8x12xi32>
    %30 = arith.select %29, %27, %22 : vector<8x12xi1>, vector<8x12xf32>
    %c0_19 = arith.constant 0 : index
    %c0_20 = arith.constant 0 : index
    %31 = vector.load %arg8[%c0_19, %c0_20] : memref<8x12xf32, #tpu.memory_space<vmem>>, vector<8x12xf32>
    tpu.vector_store %arg8[%c0_19, %c0_20], %30 {strides = array<i32>} : memref<8x12xf32, #tpu.memory_space<vmem>>, vector<8x12xf32>,
    return
  }
  func.func @transform_0(%arg0: i32) -> (i32, i32) {
    %c0_i32 = arith.constant 0 : i32
    %c0_i32_0 = arith.constant 0 : i32
    return %arg0, %c0_i32 : i32, i32
  }
  func.func @transform_1(%arg0: i32) -> (i32, i32) {
    %c0_i32 = arith.constant 0 : i32
    %c0_i32_0 = arith.constant 0 : i32
    %c0_i32_1 = arith.constant 0 : i32
    return %c0_i32, %c0_i32_0 : i32, i32
  }
  func.func @transform_2(%arg0: i32) -> (i32, i32) {
    %c0_i32 = arith.constant 0 : i32
    %c0_i32_0 = arith.constant 0 : i32
    %c0_i32_1 = arith.constant 0 : i32
    return %c0_i32, %c0_i32_0 : i32, i32
  }
  func.func @transform_3(%arg0: i32) -> (i32, i32) {
    %c0_i32 = arith.constant 0 : i32
    %c0_i32_0 = arith.constant 0 : i32
    %c0_i32_1 = arith.constant 0 : i32
    return %c0_i32, %c0_i32_0 : i32, i32
  }
  func.func @transform_4(%arg0: i32) -> (i32, i32) {
    %c0_i32 = arith.constant 0 : i32
    %c0_i32_0 = arith.constant 0 : i32
    %c0_i32_1 = arith.constant 0 : i32
    return %c0_i32, %c0_i32_0 : i32, i32
  }
  func.func @transform_5(%arg0: i32) -> (i32, i32) {
    %c0_i32 = arith.constant 0 : i32
    %c0_i32_0 = arith.constant 0 : i32
    %c0_i32_1 = arith.constant 0 : i32
    return %c0_i32, %c0_i32_0 : i32, i32
  }
  func.func @transform_6(%arg0: i32) -> (i32, i32) {
    %c0_i32 = arith.constant 0 : i32
    %c0_i32_0 = arith.constant 0 : i32
    %c0_i32_1 = arith.constant 0 : i32
    return %c0_i32, %c0_i32_0 : i32, i32
  }
  func.func @transform_7(%arg0: i32) -> (i32, i32) {
    %c0_i32 = arith.constant 0 : i32
    %c0_i32_0 = arith.constant 0 : i32
    return %arg0, %c0_i32 : i32, i32
  }
}

</mosaic_0001>

<llo_original>
// kernel: tpu_custom_call.1
$region0: #{tpu_custom_call.1}
  #allocation0 [shape = 'u32[]', space=smem, size = 0x4, offset = 0x4, fixed_abs, tag = 'smem constant byte address 0x4 - core index']
  #allocation1 [shape = 'u32[144,128]{1,0:T(1,128)}', space=vmem, size = 0x12000, scoped, tag = 'internal scratch']
  %s0 = inlined_call_operand.vmem [shape: f32[8,17], index: 0, kind: input, shape index: {}]
  %s1 = inlined_call_operand.vmem [shape: bf16[17,256], index: 1, kind: input, shape index: {}]
  %s2 = inlined_call_operand.vmem [shape: f32[1,256], index: 2, kind: input, shape index: {}]
  %s3 = inlined_call_operand.hbm [shape: bf16[256,256], index: 3, kind: input, shape index: {}]
  %s4 = inlined_call_operand.vmem [shape: f32[1,256], index: 4, kind: input, shape index: {}]
  %s5 = inlined_call_operand.vmem [shape: bf16[256,12], index: 5, kind: input, shape index: {}]
  %s6 = inlined_call_operand.vmem [shape: f32[1,12], index: 6, kind: input, shape index: {}]
  %s7 = inlined_call_operand.hbm [shape: f32[8,12], index: 7, kind: output, shape index: {}]
  %s8 = sld [smem:[#allocation0]]
  $region42: #{tpu_custom_call.1} parent=0
    _
  %s10 = ssub.s32 1, %s8
  %s11 = scalar_select 0, %s10, %s8
  $region1: #{tpu_custom_call.1} parent=0
    #allocation2 [shape = 'u8[131072]{0}', space=vmem, size = 0x20000, scoped, tag = 'input window, operand 3, single buffered']
    #allocation3 [shape = 's32[1]{0}', space=sflag, size = 0x4, scoped, tag = 'scoped memory for tpu_custom_call.1']
    #allocation4 [shape = 's32[1]{0}', space=sflag, size = 0x4, scoped, tag = 'scoped memory for tpu_custom_call.1']
    #allocation5 [shape = 'u8[4096]{0}', space=vmem, size = 0x1000, scoped, tag = 'output window, operand 0, single buffered']
    %12 = vsyncpa [#allocation3], 0
    %13 = vsyncpa [#allocation4], 0
    // Predicated region
    $region2: #{tpu_custom_call.1} parent=1 // pred_check
      _
    $region3: #{tpu_custom_call.1} parent=1 // pred_check_branch
      %15 = sbr.rel (0) target = $region5
    $region4: #{tpu_custom_call.1} parent=1 // pred_region
      _
    $region5: #{tpu_custom_call.1} parent=1 // pred_fallthru
      _
    // Predicated region
    $region6: #{tpu_custom_call.1} parent=1 // pred_check
      _
    $region7: #{tpu_custom_call.1} parent=1 // pred_check_branch
      %17 = sbr.rel (0) target = $region9
    $region8: #{tpu_custom_call.1} parent=1 // pred_region
      _
    $region9: #{tpu_custom_call.1} parent=1 // pred_fallthru
      _
    // Predicated region
    $region10: #{tpu_custom_call.1} parent=1 // pred_check
      _
    $region11: #{tpu_custom_call.1} parent=1 // pred_check_branch
      %19 = sbr.rel (0) target = $region13
    $region12: #{tpu_custom_call.1} parent=1 // pred_region
      _
    $region13: #{tpu_custom_call.1} parent=1 // pred_fallthru
      _
    // Predicated region
    $region14: #{tpu_custom_call.1} parent=1 // pred_check
      _
    $region15: #{tpu_custom_call.1} parent=1 // pred_check_branch
      %21 = sbr.rel (0) target = $region17
    $region16: #{tpu_custom_call.1} parent=1 // pred_region
      %s23 = ssub.s32 4096, 4096
      %24 = vsyncadd [#allocation3], %s23
      %s25 = sshll.u32 [#allocation2], 4
      %s26 = int_to_ptr.vmem [resolvable:$true] %s25
      %31 = dma.hbm_to_vmem [thread:$0]  %s3, 4096, %s26, [#allocation3], 128, 128, 8
    $region17: #{tpu_custom_call.1} parent=1 // pred_fallthru
      _
    // Predicated region
    $region18: #{tpu_custom_call.1} parent=1 // pred_check
      _
    $region19: #{tpu_custom_call.1} parent=1 // pred_check_branch
      %33 = sbr.rel (0) target = $region21
    $region20: #{tpu_custom_call.1} parent=1 // pred_region
      _
    $region21: #{tpu_custom_call.1} parent=1 // pred_fallthru
      _
    // Predicated region
    $region22: #{tpu_custom_call.1} parent=1 // pred_check
      _
    $region23: #{tpu_custom_call.1} parent=1 // pred_check_branch
      %35 = sbr.rel (0) target = $region25
    $region24: #{tpu_custom_call.1} parent=1 // pred_region
      _
    $region25: #{tpu_custom_call.1} parent=1 // pred_fallthru
      _
    // Predicated region
    $region26: #{tpu_custom_call.1} parent=1 // pred_check
      _
    $region27: #{tpu_custom_call.1} parent=1 // pred_check_branch
      %37 = sbr.rel (0) target = $region29
    $region28: #{tpu_custom_call.1} parent=1 // pred_region
      _
    $region29: #{tpu_custom_call.1} parent=1 // pred_fallthru
      _
    // Predicated region
    $region30: #{tpu_custom_call.1} parent=1 // pred_check
      _
    $region31: #{tpu_custom_call.1} parent=1 // pred_check_branch
      %39 = sbr.rel (0) target = $region33
    $region32: #{tpu_custom_call.1} parent=1 // pred_region
      %40 = dma.done [#allocation3], 4096
    $region33: #{tpu_custom_call.1} parent=1 // pred_fallthru
      _
    %v42 = vld [vmem:[%s0] sm:$0xff]
    %v43 = vpack.c.bf16 %v42, %v42
    %v44 = vld [vmem:[%s1] sm:$0xff]
    %v45 = vld [vmem:[%s1 + $0x8] sm:$0xff]
    %v46 = vld [vmem:[%s1 + $0x10] sm:$0x11]
    %v47 = vld [vmem:[%s2] sm:$0x3]
    %v49 = vlaneseq
    %v50 = vshrl.u32 %v49, 7
    %v51 = vsub.s32 0, %v50
    %v52 = vrot.slane %v47, %v51
    %v53 = vlaneseq
    %v54 = vshrl.u32 %v53, 7
    %v55 = vsub.s32 1, %v54
    %v56 = vrot.slane %v47, %v55
    %v62 = vunpack.c.l.b16 %v44
    %v63 = vunpack.c.h.b16 %v44
    %v64 = vunpack.c.l.b16 %v45
    %v65 = vunpack.c.h.b16 %v45
    %v66 = vunpack.c.l.b16 %v46
    %v67 = vunpack.c.h.b16 %v46
    %v68 = vpack.c.b16 %v64, %v62
    %v69 = vpack.c.b16 %v65, %v63
    %v70 = vpack.c.b16 %v66, %v66
    %v71 = vpack.c.b16 %v67, %v67
    %vm74 = vcmask 138240
    %v76 = vsel %vm74, %v43, 0
    %vm78 = vcmask 1040384
    %v79 = vsel 0, 4294967295, 65535
    %v80 = vsel %vm78, %v79, 0
    %v82 = vand.u32 %v70, %v80
    %v85 = vand.u32 %v71, %v80
    %87 = vmatprep.subr.bf16.mxu0 %v69
    %88 = vmatpush1.bf16.msra.mxu0 %v68
    %89 = vmatprep.subr.bf16.mxu0 %v85
    %90 = vmatpush1.bf16.msra.mxu0 %v82
    %91 = vmatprep.subr.bf16.mxu0 0
    %92 = vmatpush1.bf16.msra.mxu0 0
    %93 = vmatprep.subr.bf16.mxu0 0
    %94 = vmatpush1.bf16.msra.mxu0 0
    %95 = vmatprep.subr.bf16.mxu0 0
    %96 = vmatpush1.bf16.msra.mxu0 0
    %97 = vmatprep.subr.bf16.mxu0 0
    %98 = vmatpush1.bf16.msra.mxu0 0
    %99 = vmatprep.subr.bf16.mxu0 0
    %100 = vmatpush1.bf16.msra.mxu0 0
    %101 = vmatprep.subr.bf16.mxu0 0
    %102 = vmatpush1.bf16.msra.mxu0 0
    %103 = vmatprep.subr.bf16.mxu0 0
    %104 = vmatpush1.bf16.msra.mxu0 0
    %105 = vmatprep.subr.bf16.mxu0 0
    %106 = vmatpush1.bf16.msra.mxu0 0
    %107 = vmatprep.subr.bf16.mxu0 0
    %108 = vmatpush1.bf16.msra.mxu0 0
    %109 = vmatprep.subr.bf16.mxu0 0
    %110 = vmatpush1.bf16.msra.mxu0 0
    %111 = vmatprep.subr.bf16.mxu0 0
    %112 = vmatpush1.bf16.msra.mxu0 0
    %113 = vmatprep.subr.bf16.mxu0 0
    %114 = vmatpush1.bf16.msra.mxu0 0
    %115 = vmatprep.subr.bf16.mxu0 0
    %116 = vmatpush1.bf16.msra.mxu0 0
    %117 = vmatprep.subr.bf16.mxu0 0
    %118 = vmatpush1.bf16.msra.mxu0 0
    %119 = vmatprep.mubr.bf16.mxu0 0
    %120 = vmatmul.mubr.bf16.gmra.mrb[0].mxu0 %v76
    %v121 = vpop.f32.mrb[0].mxu0
    %v122 = vadd.f32 %v52, %v121
    %v123 = vpop.f32.mrb[0].mxu0
    %v124 = vadd.f32 %v56, %v123
    %v125 = vpop.f32.mrb[0].mxu0
    %v126 = vpop.f32.mrb[0].mxu0
    %127 = vdwg.mxu0
    %v128 = vmax.f32 %v122, 0.0
    %v129 = vmax.f32 %v124, 0.0
    %v130 = vpack.c.bf16 %v128, %v128
    %v131 = vpack.c.bf16 %v129, %v129
    %v132 = vld [vmem:[#allocation2] sm:$0xff]
    %v133 = vld [vmem:[#allocation2 + $0x8] sm:$0xff]
    %v134 = vld [vmem:[#allocation2 + $0x10] sm:$0xff]
    %v135 = vld [vmem:[#allocation2 + $0x18] sm:$0xff]
    %v136 = vld [vmem:[#allocation2 + $0x20] sm:$0xff]
    %v137 = vld [vmem:[#allocation2 + $0x28] sm:$0xff]
    %v138 = vld [vmem:[#allocation2 + $0x30] sm:$0xff]
    %v139 = vld [vmem:[#allocation2 + $0x38] sm:$0xff]
    %v140 = vld [vmem:[#allocation2 + $0x40] sm:$0xff]
    %v141 = vld [vmem:[#allocation2 + $0x48] sm:$0xff]
    %v142 = vld [vmem:[#allocation2 + $0x50] sm:$0xff]
    %v143 = vld [vmem:[#allocation2 + $0x58] sm:$0xff]
    %v144 = vld [vmem:[#allocation2 + $0x60] sm:$0xff]
    %v145 = vld [vmem:[#allocation2 + $0x68] sm:$0xff]
    %v146 = vld [vmem:[#allocation2 + $0x70] sm:$0xff]
    %v147 = vld [vmem:[#allocation2 + $0x78] sm:$0xff]
    %v148 = vld [vmem:[#allocation2 + $0x80] sm:$0xff]
    %v149 = vld [vmem:[#allocation2 + $0x88] sm:$0xff]
    %v150 = vld [vmem:[#allocation2 + $0x90] sm:$0xff]
    %v151 = vld [vmem:[#allocation2 + $0x98] sm:$0xff]
    %v152 = vld [vmem:[#allocation2 + $0xa0] sm:$0xff]
    %v153 = vld [vmem:[#allocation2 + $0xa8] sm:$0xff]
    %v154 = vld [vmem:[#allocation2 + $0xb0] sm:$0xff]
    %v155 = vld [vmem:[#allocation2 + $0xb8] sm:$0xff]
    %v156 = vld [vmem:[#allocation2 + $0xc0] sm:$0xff]
    %v157 = vld [vmem:[#allocation2 + $0xc8] sm:$0xff]
    %v158 = vld [vmem:[#allocation2 + $0xd0] sm:$0xff]
    %v159 = vld [vmem:[#allocation2 + $0xd8] sm:$0xff]
    %v160 = vld [vmem:[#allocation2 + $0xe0] sm:$0xff]
    %v161 = vld [vmem:[#allocation2 + $0xe8] sm:$0xff]
    %v162 = vld [vmem:[#allocation2 + $0xf0] sm:$0xff]
    %v163 = vld [vmem:[#allocation2 + $0xf8] sm:$0xff]
    %v164 = vld [vmem:[%s4] sm:$0x3]
    %v166 = vlaneseq
    %v167 = vshrl.u32 %v166, 7
    %v168 = vsub.s32 0, %v167
    %v169 = vrot.slane %v164, %v168
    %v170 = vlaneseq
    %v171 = vshrl.u32 %v170, 7
    %v172 = vsub.s32 1, %v171
    %v173 = vrot.slane %v164, %v172
    %v208 = vunpack.c.l.b16 %v132
    %v209 = vunpack.c.h.b16 %v132
    %v210 = vunpack.c.l.b16 %v133
    %v211 = vunpack.c.h.b16 %v133
    %v212 = vunpack.c.l.b16 %v134
    %v213 = vunpack.c.h.b16 %v134
    %v214 = vunpack.c.l.b16 %v135
    %v215 = vunpack.c.h.b16 %v135
    %v216 = vunpack.c.l.b16 %v136
    %v217 = vunpack.c.h.b16 %v136
    %v218 = vunpack.c.l.b16 %v137
    %v219 = vunpack.c.h.b16 %v137
    %v220 = vunpack.c.l.b16 %v138
    %v221 = vunpack.c.h.b16 %v138
    %v222 = vunpack.c.l.b16 %v139
    %v223 = vunpack.c.h.b16 %v139
    %v224 = vunpack.c.l.b16 %v140
    %v225 = vunpack.c.h.b16 %v140
    %v226 = vunpack.c.l.b16 %v141
    %v227 = vunpack.c.h.b16 %v141
    %v228 = vunpack.c.l.b16 %v142
    %v229 = vunpack.c.h.b16 %v142
    %v230 = vunpack.c.l.b16 %v143
    %v231 = vunpack.c.h.b16 %v143
    %v232 = vunpack.c.l.b16 %v144
    %v233 = vunpack.c.h.b16 %v144
    %v234 = vunpack.c.l.b16 %v145
    %v235 = vunpack.c.h.b16 %v145
    %v236 = vunpack.c.l.b16 %v146
    %v237 = vunpack.c.h.b16 %v146
    %v238 = vunpack.c.l.b16 %v147
    %v239 = vunpack.c.h.b16 %v147
    %v240 = vunpack.c.l.b16 %v148
    %v241 = vunpack.c.h.b16 %v148
    %v242 = vunpack.c.l.b16 %v149
    %v243 = vunpack.c.h.b16 %v149
    %v244 = vunpack.c.l.b16 %v150
    %v245 = vunpack.c.h.b16 %v150
    %v246 = vunpack.c.l.b16 %v151
    %v247 = vunpack.c.h.b16 %v151
    %v248 = vunpack.c.l.b16 %v152
    %v249 = vunpack.c.h.b16 %v152
    %v250 = vunpack.c.l.b16 %v153
    %v251 = vunpack.c.h.b16 %v153
    %v252 = vunpack.c.l.b16 %v154
    %v253 = vunpack.c.h.b16 %v154
    %v254 = vunpack.c.l.b16 %v155
    %v255 = vunpack.c.h.b16 %v155
    %v256 = vunpack.c.l.b16 %v156
    %v257 = vunpack.c.h.b16 %v156
    %v258 = vunpack.c.l.b16 %v157
    %v259 = vunpack.c.h.b16 %v157
    %v260 = vunpack.c.l.b16 %v158
    %v261 = vunpack.c.h.b16 %v158
    %v262 = vunpack.c.l.b16 %v159
    %v263 = vunpack.c.h.b16 %v159
    %v264 = vunpack.c.l.b16 %v160
    %v265 = vunpack.c.h.b16 %v160
    %v266 = vunpack.c.l.b16 %v161
    %v267 = vunpack.c.h.b16 %v161
    %v268 = vunpack.c.l.b16 %v162
    %v269 = vunpack.c.h.b16 %v162
    %v270 = vunpack.c.l.b16 %v163
    %v271 = vunpack.c.h.b16 %v163
    %v272 = vpack.c.b16 %v210, %v208
    %v273 = vpack.c.b16 %v211, %v209
    %v274 = vpack.c.b16 %v214, %v212
    %v275 = vpack.c.b16 %v215, %v213
    %v276 = vpack.c.b16 %v218, %v216
    %v277 = vpack.c.b16 %v219, %v217
    %v278 = vpack.c.b16 %v222, %v220
    %v279 = vpack.c.b16 %v223, %v221
    %v280 = vpack.c.b16 %v226, %v224
    %v281 = vpack.c.b16 %v227, %v225
    %v282 = vpack.c.b16 %v230, %v228
    %v283 = vpack.c.b16 %v231, %v229
    %v284 = vpack.c.b16 %v234, %v232
    %v285 = vpack.c.b16 %v235, %v233
    %v286 = vpack.c.b16 %v238, %v236
    %v287 = vpack.c.b16 %v239, %v237
    %v288 = vpack.c.b16 %v242, %v240
    %v289 = vpack.c.b16 %v243, %v241
    %v290 = vpack.c.b16 %v246, %v244
    %v291 = vpack.c.b16 %v247, %v245
    %v292 = vpack.c.b16 %v250, %v248
    %v293 = vpack.c.b16 %v251, %v249
    %v294 = vpack.c.b16 %v254, %v252
    %v295 = vpack.c.b16 %v255, %v253
    %v296 = vpack.c.b16 %v258, %v256
    %v297 = vpack.c.b16 %v259, %v257
    %v298 = vpack.c.b16 %v262, %v260
    %v299 = vpack.c.b16 %v263, %v261
    %v300 = vpack.c.b16 %v266, %v264
    %v301 = vpack.c.b16 %v267, %v265
    %v302 = vpack.c.b16 %v270, %v268
    %v303 = vpack.c.b16 %v271, %v269
    %336 = vmatprep.subr.bf16.mxu0 %v273
    %337 = vmatpush1.bf16.msra.mxu0 %v272
    %338 = vmatprep.subr.bf16.mxu0 %v275
    %339 = vmatpush1.bf16.msra.mxu0 %v274
    %340 = vmatprep.subr.bf16.mxu0 %v277
    %341 = vmatpush1.bf16.msra.mxu0 %v276
    %342 = vmatprep.subr.bf16.mxu0 %v279
    %343 = vmatpush1.bf16.msra.mxu0 %v278
    %344 = vmatprep.subr.bf16.mxu0 %v281
    %345 = vmatpush1.bf16.msra.mxu0 %v280
    %346 = vmatprep.subr.bf16.mxu0 %v283
    %347 = vmatpush1.bf16.msra.mxu0 %v282
    %348 = vmatprep.subr.bf16.mxu0 %v285
    %349 = vmatpush1.bf16.msra.mxu0 %v284
    %350 = vmatprep.subr.bf16.mxu0 %v287
    %351 = vmatpush1.bf16.msra.mxu0 %v286
    %352 = vmatprep.subr.bf16.mxu0 %v289
    %353 = vmatpush1.bf16.msra.mxu0 %v288
    %354 = vmatprep.subr.bf16.mxu0 %v291
    %355 = vmatpush1.bf16.msra.mxu0 %v290
    %356 = vmatprep.subr.bf16.mxu0 %v293
    %357 = vmatpush1.bf16.msra.mxu0 %v292
    %358 = vmatprep.subr.bf16.mxu0 %v295
    %359 = vmatpush1.bf16.msra.mxu0 %v294
    %360 = vmatprep.subr.bf16.mxu0 %v297
    %361 = vmatpush1.bf16.msra.mxu0 %v296
    %362 = vmatprep.subr.bf16.mxu0 %v299
    %363 = vmatpush1.bf16.msra.mxu0 %v298
    %364 = vmatprep.subr.bf16.mxu0 %v301
    %365 = vmatpush1.bf16.msra.mxu0 %v300
    %366 = vmatprep.subr.bf16.mxu0 %v303
    %367 = vmatpush1.bf16.msra.mxu0 %v302
    %368 = vmatprep.mubr.bf16.mxu0 %v131
    %369 = vmatmul.mubr.bf16.gmra.mrb[0].mxu0 %v130
    %v370 = vpop.f32.mrb[0].mxu0
    %v371 = vadd.f32 %v169, %v370
    %v372 = vpop.f32.mrb[0].mxu0
    %v373 = vadd.f32 %v173, %v372
    %v374 = vpop.f32.mrb[0].mxu0
    %v375 = vpop.f32.mrb[0].mxu0
    %376 = vdwg.mxu0
    %v377 = vmax.f32 %v371, 0.0
    %v378 = vmax.f32 %v373, 0.0
    %v379 = vpack.c.bf16 %v377, %v377
    %v380 = vpack.c.bf16 %v378, %v378
    %v381 = vld [vmem:[%s5] sm:$0xf]
    %v382 = vld [vmem:[%s5 + $0x4] sm:$0xf]
    %v383 = vld [vmem:[%s5 + $0x8] sm:$0xf]
    %v384 = vld [vmem:[%s5 + $0xc] sm:$0xf]
    %v385 = vld [vmem:[%s5 + $0x10] sm:$0xf]
    %v386 = vld [vmem:[%s5 + $0x14] sm:$0xf]
    %v387 = vld [vmem:[%s5 + $0x18] sm:$0xf]
    %v388 = vld [vmem:[%s5 + $0x1c] sm:$0xf]
    %v389 = vld [vmem:[%s5 + $0x20] sm:$0xf]
    %v390 = vld [vmem:[%s5 + $0x24] sm:$0xf]
    %v391 = vld [vmem:[%s5 + $0x28] sm:$0xf]
    %v392 = vld [vmem:[%s5 + $0x2c] sm:$0xf]
    %v393 = vld [vmem:[%s5 + $0x30] sm:$0xf]
    %v394 = vld [vmem:[%s5 + $0x34] sm:$0xf]
    %v395 = vld [vmem:[%s5 + $0x38] sm:$0xf]
    %v396 = vld [vmem:[%s5 + $0x3c] sm:$0xf]
    %v397 = vld [vmem:[%s5 + $0x40] sm:$0xf]
    %v398 = vld [vmem:[%s5 + $0x44] sm:$0xf]
    %v399 = vld [vmem:[%s5 + $0x48] sm:$0xf]
    %v400 = vld [vmem:[%s5 + $0x4c] sm:$0xf]
    %v401 = vld [vmem:[%s5 + $0x50] sm:$0xf]
    %v402 = vld [vmem:[%s5 + $0x54] sm:$0xf]
    %v403 = vld [vmem:[%s5 + $0x58] sm:$0xf]
    %v404 = vld [vmem:[%s5 + $0x5c] sm:$0xf]
    %v405 = vld [vmem:[%s5 + $0x60] sm:$0xf]
    %v406 = vld [vmem:[%s5 + $0x64] sm:$0xf]
    %v407 = vld [vmem:[%s5 + $0x68] sm:$0xf]
    %v408 = vld [vmem:[%s5 + $0x6c] sm:$0xf]
    %v409 = vld [vmem:[%s5 + $0x70] sm:$0xf]
    %v410 = vld [vmem:[%s5 + $0x74] sm:$0xf]
    %v411 = vld [vmem:[%s5 + $0x78] sm:$0xf]
    %v412 = vld [vmem:[%s5 + $0x7c] sm:$0xf]
    %v413 = vld [vmem:[%s6] sm:$0x1]
    %v415 = vlaneseq
    %v416 = vshrl.u32 %v415, 7
    %v417 = vsub.s32 0, %v416
    %v418 = vrot.slane %v413, %v417
    %v452 = vunpack.c.l.b16 %v381
    %v453 = vunpack.c.l.b16 %v382
    %v454 = vunpack.c.l.b16 %v383
    %v455 = vunpack.c.l.b16 %v384
    %v456 = vunpack.c.l.b16 %v385
    %v457 = vunpack.c.l.b16 %v386
    %v458 = vunpack.c.l.b16 %v387
    %v459 = vunpack.c.l.b16 %v388
    %v460 = vunpack.c.l.b16 %v389
    %v461 = vunpack.c.l.b16 %v390
    %v462 = vunpack.c.l.b16 %v391
    %v463 = vunpack.c.l.b16 %v392
    %v464 = vunpack.c.l.b16 %v393
    %v465 = vunpack.c.l.b16 %v394
    %v466 = vunpack.c.l.b16 %v395
    %v467 = vunpack.c.l.b16 %v396
    %v468 = vunpack.c.l.b16 %v397
    %v469 = vunpack.c.l.b16 %v398
    %v470 = vunpack.c.l.b16 %v399
    %v471 = vunpack.c.l.b16 %v400
    %v472 = vunpack.c.l.b16 %v401
    %v473 = vunpack.c.l.b16 %v402
    %v474 = vunpack.c.l.b16 %v403
    %v475 = vunpack.c.l.b16 %v404
    %v476 = vunpack.c.l.b16 %v405
    %v477 = vunpack.c.l.b16 %v406
    %v478 = vunpack.c.l.b16 %v407
    %v479 = vunpack.c.l.b16 %v408
    %v480 = vunpack.c.l.b16 %v409
    %v481 = vunpack.c.l.b16 %v410
    %v482 = vunpack.c.l.b16 %v411
    %v483 = vunpack.c.l.b16 %v412
    %v484 = vpack.c.b16 %v453, %v452
    %v485 = vpack.c.b16 %v455, %v454
    %v486 = vpack.c.b16 %v457, %v456
    %v487 = vpack.c.b16 %v459, %v458
    %v488 = vpack.c.b16 %v461, %v460
    %v489 = vpack.c.b16 %v463, %v462
    %v490 = vpack.c.b16 %v465, %v464
    %v491 = vpack.c.b16 %v467, %v466
    %v492 = vpack.c.b16 %v469, %v468
    %v493 = vpack.c.b16 %v471, %v470
    %v494 = vpack.c.b16 %v473, %v472
    %v495 = vpack.c.b16 %v475, %v474
    %v496 = vpack.c.b16 %v477, %v476
    %v497 = vpack.c.b16 %v479, %v478
    %v498 = vpack.c.b16 %v481, %v480
    %v499 = vpack.c.b16 %v483, %v482
    %516 = vmatprep.subr.bf16.mxu0 0
    %517 = vmatpush1.bf16.msra.mxu0 %v484
    %518 = vmatprep.subr.bf16.mxu0 0
    %519 = vmatpush1.bf16.msra.mxu0 %v485
    %520 = vmatprep.subr.bf16.mxu0 0
    %521 = vmatpush1.bf16.msra.mxu0 %v486
    %522 = vmatprep.subr.bf16.mxu0 0
    %523 = vmatpush1.bf16.msra.mxu0 %v487
    %524 = vmatprep.subr.bf16.mxu0 0
    %525 = vmatpush1.bf16.msra.mxu0 %v488
    %526 = vmatprep.subr.bf16.mxu0 0
    %527 = vmatpush1.bf16.msra.mxu0 %v489
    %528 = vmatprep.subr.bf16.mxu0 0
    %529 = vmatpush1.bf16.msra.mxu0 %v490
    %530 = vmatprep.subr.bf16.mxu0 0
    %531 = vmatpush1.bf16.msra.mxu0 %v491
    %532 = vmatprep.subr.bf16.mxu0 0
    %533 = vmatpush1.bf16.msra.mxu0 %v492
    %534 = vmatprep.subr.bf16.mxu0 0
    %535 = vmatpush1.bf16.msra.mxu0 %v493
    %536 = vmatprep.subr.bf16.mxu0 0
    %537 = vmatpush1.bf16.msra.mxu0 %v494
    %538 = vmatprep.subr.bf16.mxu0 0
    %539 = vmatpush1.bf16.msra.mxu0 %v495
    %540 = vmatprep.subr.bf16.mxu0 0
    %541 = vmatpush1.bf16.msra.mxu0 %v496
    %542 = vmatprep.subr.bf16.mxu0 0
    %543 = vmatpush1.bf16.msra.mxu0 %v497
    %544 = vmatprep.subr.bf16.mxu0 0
    %545 = vmatpush1.bf16.msra.mxu0 %v498
    %546 = vmatprep.subr.bf16.mxu0 0
    %547 = vmatpush1.bf16.msra.mxu0 %v499
    %548 = vmatprep.mubr.bf16.mxu0 %v380
    %549 = vmatmul.mubr.bf16.gmra.mrb[0].mxu0 %v379
    %v550 = vpop.f32.mrb[0].mxu0
    %v551 = vadd.f32 %v418, %v550
    %v552 = vpop.f32.mrb[0].mxu0
    %v553 = vpop.f32.mrb[0].mxu0
    %v554 = vpop.f32.mrb[0].mxu0
    %555 = vdwg.mxu0
    %v556 = vlaneseq
    %v557 = vand.u32 %v556, 127
    %v558 = vmax.f32 %v551, -20.0
    %v559 = vmin.f32 %v558, 2.0
    %vm560 = vcmp.ge.s32.totalorder %v557, 6
    %v561 = vsel %vm560, %v559, %v551
    %vm562 = vcmask 97280
    %563 = vst.msk [vmem:[#allocation5] sm:$0xff] %vm562, %v561
    // Predicated region
    $region34: #{tpu_custom_call.1} parent=1 // pred_check
      _
    $region35: #{tpu_custom_call.1} parent=1 // pred_check_branch
      %565 = sbr.rel (0) target = $region37
    $region36: #{tpu_custom_call.1} parent=1 // pred_region
      %s567 = ssub.s32 128, 128
      %568 = vsyncadd [#allocation4], %s567
      %s570 = sshll.u32 [#allocation5], 4
      %s571 = int_to_ptr.vmem [resolvable:$true] %s570
      %573 = dma.vmem_to_hbm [thread:$0]  %s571, 128, %s7, [#allocation4]
    $region37: #{tpu_custom_call.1} parent=1 // pred_fallthru
      _
    // Predicated region
    $region38: #{tpu_custom_call.1} parent=1 // pred_check
      _
    $region39: #{tpu_custom_call.1} parent=1 // pred_check_branch
      %575 = sbr.rel (0) target = $region41
    $region40: #{tpu_custom_call.1} parent=1 // pred_region
      %576 = dma.done [#allocation4], 128
    $region41: #{tpu_custom_call.1} parent=1 // pred_fallthru
      _
    %577 = vsyncpa [#allocation3], 1
    %578 = vsyncpa [#allocation4], 1

</llo_original>
